<compile_context>
chip_gen: v6e
topology: v6e:2x2x1
jax: 0.10.0
libtpu: 0.0.40
codegen_flags: <defaults>
</compile_context>

<pallas_src>
import jax
import jax.numpy as jnp
from jax import lax
from jax.experimental import pallas as pl
from jax.experimental.pallas import tpu as pltpu


# --------------------------------------------------------------------------
# Helpers
# --------------------------------------------------------------------------
def _round_up(x, m):
    return (x + m - 1) // m * m


def _row_tiling(n, max_tile):
    """Pad row count to a multiple of 8 and pick a tile that divides it."""
    n_pad = _round_up(max(n, 8), 8)
    tile = min(max_tile, n_pad)
    n_pad = _round_up(n_pad, tile)
    return n_pad, tile


def _preferred_hw_tile():
    """Larger HW tiles on 128-MiB-VMEM chips (v5e/v6e), smaller on v7x (64 MiB)."""
    try:
        vmem = pltpu.get_tpu_info().vmem_capacity_bytes
    except Exception:
        vmem = 64 * 1024 * 1024
    return 2048 if vmem >= (96 * 1024 * 1024) else 1024


_COMPILER_PARAMS = pltpu.CompilerParams(
    dimension_semantics=("parallel", "arbitrary"),  # rows parallel, HW reduction
    vmem_limit_bytes=48 * 1024 * 1024,
)


def _mask_from_boxes(boxes_ref, yy_ref, xx_ref):
    """Build the (row_tile, hw_tile) binary ROI mask in-kernel (VPU work)."""
    b = boxes_ref[...]                     # (row_tile, 4) f32: x1,y1,x2,y2
    x1, y1, x2, y2 = b[:, 0:1], b[:, 1:2], b[:, 2:3], b[:, 3:4]
    xx = xx_ref[...]                       # (1, hw_tile) f32 (padded entries = -1e9)
    yy = yy_ref[...]
    return (xx >= x1) & (xx < x2) & (yy >= y1) & (yy < y2)


# --------------------------------------------------------------------------
# Kernel A: box path = ROI average pool + box FC head + object classifier.
# grid = (row_tiles_of_N, hw_tiles); HW is the reduction axis (last, "arbitrary").
# --------------------------------------------------------------------------
def _box_path_kernel(boxes_ref, yy_ref, xx_ref, feat_ref,
                     bw1_ref, bb1_ref, bw2_ref, bb2_ref, cw_ref, cb_ref,
                     roi_out_ref, roi_bf16_out_ref, logit_out_ref,
                     acc_pool, acc_cnt):
    hw = pl.program_id(1)

    @pl.when(hw == 0)
    def _():
        acc_pool[...] = jnp.zeros_like(acc_pool)
        acc_cnt[...] = jnp.zeros_like(acc_cnt)

    inside = _mask_from_boxes(boxes_ref, yy_ref, xx_ref)          # (nt, hw_tile) bool
    inside_f = inside.astype(jnp.float32)
    acc_cnt[...] += inside_f.sum(axis=-1, keepdims=True)          # XLU reduce (free slot)
    acc_pool[...] += jnp.dot(inside_f.astype(jnp.bfloat16), feat_ref[...],
                             preferred_element_type=jnp.float32)   # (nt, C) MXU

    @pl.when(hw == pl.num_programs(1) - 1)
    def _():
        inv = pl.reciprocal(jnp.maximum(acc_cnt[...], 1.0), approx=True)
        pooled = (acc_pool[...] * inv).astype(jnp.bfloat16)        # (nt, C)
        h = jnp.dot(pooled, bw1_ref[...],
                    preferred_element_type=jnp.float32) + bb1_ref[...]
        h = jnp.maximum(h, 0.0).astype(jnp.bfloat16)
        rf = jnp.dot(h, bw2_ref[...],
                     preferred_element_type=jnp.float32) + bb2_ref[...]
        rf = jnp.maximum(rf, 0.0)                                  # (nt, feat_dim) f32
        roi_out_ref[...] = rf
        roi_bf16_out_ref[...] = rf.astype(jnp.bfloat16)            # feeds kernel B directly
        logit_out_ref[...] = (jnp.dot(rf.astype(jnp.bfloat16), cw_ref[...],
                                      preferred_element_type=jnp.float32)
                              + cb_ref[...])                       # (nt, 128) lane-dense


def box_path(boxes_p, yy, xx, featT, bw1, bb1, bw2, bb2, cw, cb, *, n_tile, hw_tile):
    n_pad = boxes_p.shape[0]
    hw_pad, c_in = featT.shape
    hidden = bw1.shape[1]
    feat_dim = bw2.shape[1]
    obj_pad = cw.shape[1]
    grid = (n_pad // n_tile, hw_pad // hw_tile)

    return pl.pallas_call(
        _box_path_kernel,
        out_shape=(jax.ShapeDtypeStruct((n_pad, feat_dim), jnp.float32),
                   jax.ShapeDtypeStruct((n_pad, feat_dim), jnp.bfloat16),
                   jax.ShapeDtypeStruct((n_pad, obj_pad), jnp.float32)),
        grid_spec=pltpu.PrefetchScalarGridSpec(
            num_scalar_prefetch=0,
            grid=grid,
            in_specs=[
                pl.BlockSpec((n_tile, 4), lambda r, h: (r, 0)),        # boxes
                pl.BlockSpec((1, hw_tile), lambda r, h: (0, h)),       # yy
                pl.BlockSpec((1, hw_tile), lambda r, h: (0, h)),       # xx
                pl.BlockSpec((hw_tile, c_in), lambda r, h: (h, 0)),    # featT (bf16)
                pl.BlockSpec((c_in, hidden), lambda r, h: (0, 0)),     # bw1 (resident)
                pl.BlockSpec((1, hidden), lambda r, h: (0, 0)),        # bb1
                pl.BlockSpec((hidden, feat_dim), lambda r, h: (0, 0)),  # bw2
                pl.BlockSpec((1, feat_dim), lambda r, h: (0, 0)),      # bb2
                pl.BlockSpec((feat_dim, obj_pad), lambda r, h: (0, 0)),  # cw (padded)
                pl.BlockSpec((1, obj_pad), lambda r, h: (0, 0)),       # cb
            ],
            out_specs=[
                pl.BlockSpec((n_tile, feat_dim), lambda r, h: (r, 0)),
                pl.BlockSpec((n_tile, feat_dim), lambda r, h: (r, 0)),
                pl.BlockSpec((n_tile, obj_pad), lambda r, h: (r, 0)),
            ],
            scratch_shapes=[pltpu.VMEM((n_tile, c_in), jnp.float32),
                            pltpu.VMEM((n_tile, 1), jnp.float32)],
        ),
        compiler_params=_COMPILER_PARAMS,
    )(boxes_p, yy, xx, featT, bw1, bb1, bw2, bb2, cw, cb)


# --------------------------------------------------------------------------
# Kernel B: relation path = union ROI pool + union FC head + subj/obj gather
#           (one-hot matmul against resident roi_features) + relation predictor.
# grid = (row_tiles_of_R, hw_tiles).
# --------------------------------------------------------------------------
def _rel_path_kernel(uboxes_ref, yy_ref, xx_ref, feat_ref, pair_ref, roif_ref,
                     uw1_ref, ub1_ref, uw2_ref, ub2_ref,
                     ws_ref, wo_ref, bp_ref, wr_ref, br_ref,
                     rel_out_ref,
                     acc_pool, acc_cnt):
    hw = pl.program_id(1)

    @pl.when(hw == 0)
    def _():
        acc_pool[...] = jnp.zeros_like(acc_pool)
        acc_cnt[...] = jnp.zeros_like(acc_cnt)

    inside = _mask_from_boxes(uboxes_ref, yy_ref, xx_ref)          # (rt, hw_tile)
    inside_f = inside.astype(jnp.float32)
    acc_cnt[...] += inside_f.sum(axis=-1, keepdims=True)
    acc_pool[...] += jnp.dot(inside_f.astype(jnp.bfloat16), feat_ref[...],
                             preferred_element_type=jnp.float32)

    @pl.when(hw == pl.num_programs(1) - 1)
    def _():
        inv = pl.reciprocal(jnp.maximum(acc_cnt[...], 1.0), approx=True)
        pooled = (acc_pool[...] * inv).astype(jnp.bfloat16)        # (rt, C)
        h = jnp.maximum(jnp.dot(pooled, uw1_ref[...],
                                preferred_element_type=jnp.float32) + ub1_ref[...],
                        0.0).astype(jnp.bfloat16)
        uf = jnp.maximum(jnp.dot(h, uw2_ref[...],
                                 preferred_element_type=jnp.float32) + ub2_ref[...],
                         0.0)                                      # (rt, feat_dim) f32

        # Gather subject/object roi features via one-hot matmul (exact; MXU work).
        pair = pair_ref[...]                                       # (rt, 2) int32
        r_tile = pair.shape[0]
        n_pad = roif_ref.shape[0]
        col = lax.broadcasted_iota(jnp.int32, (r_tile, n_pad), 1)
        subj_oh = (col == pair[:, 0:1]).astype(jnp.bfloat16)
        obj_oh = (col == pair[:, 1:2]).astype(jnp.bfloat16)
        roif = roif_ref[...]                                       # (n_pad, feat_dim) bf16
        subj = jnp.dot(subj_oh, roif,
                       preferred_element_type=jnp.float32).astype(jnp.bfloat16)
        obj = jnp.dot(obj_oh, roif,
                      preferred_element_type=jnp.float32).astype(jnp.bfloat16)

        # prod = relu(concat(subj,obj) @ Wpost)  ==  relu(subj@Ws + obj@Wo + bp)
        prod = jnp.dot(subj, ws_ref[...], preferred_element_type=jnp.float32)
        prod = prod + jnp.dot(obj, wo_ref[...], preferred_element_type=jnp.float32)
        prod = jnp.maximum(prod + bp_ref[...], 0.0)
        fused = (prod * uf).astype(jnp.bfloat16)
        rel_out_ref[...] = (jnp.dot(fused, wr_ref[...],
                                    preferred_element_type=jnp.float32)
                            + br_ref[...])                         # (rt, 128) lane-dense


def rel_path(uboxes_p, yy, xx, featT, pair_p, roif_bf16,
             uw1, ub1, uw2, ub2, ws, wo, bp, wr, br, *, r_tile, hw_tile):
    r_pad = uboxes_p.shape[0]
    hw_pad, c_in = featT.shape
    n_pad, feat_dim = roif_bf16.shape
    hidden = uw1.shape[1]
    rel_pad = wr.shape[1]
    grid = (r_pad // r_tile, hw_pad // hw_tile)

    return pl.pallas_call(
        _rel_path_kernel,
        out_shape=jax.ShapeDtypeStruct((r_pad, rel_pad), jnp.float32),
        grid_spec=pltpu.PrefetchScalarGridSpec(
            num_scalar_prefetch=0,
            grid=grid,
            in_specs=[
                pl.BlockSpec((r_tile, 4), lambda r, h: (r, 0)),         # union boxes
                pl.BlockSpec((1, hw_tile), lambda r, h: (0, h)),        # yy
                pl.BlockSpec((1, hw_tile), lambda r, h: (0, h)),        # xx
                pl.BlockSpec((hw_tile, c_in), lambda r, h: (h, 0)),     # featT (bf16)
                pl.BlockSpec((r_tile, 2), lambda r, h: (r, 0)),         # pair idx (int32)
                pl.BlockSpec((n_pad, feat_dim), lambda r, h: (0, 0)),   # roi feats (bf16)
                pl.BlockSpec((c_in, hidden), lambda r, h: (0, 0)),      # uw1
                pl.BlockSpec((1, hidden), lambda r, h: (0, 0)),         # ub1
                pl.BlockSpec((hidden, feat_dim), lambda r, h: (0, 0)),  # uw2
                pl.BlockSpec((1, feat_dim), lambda r, h: (0, 0)),       # ub2
                pl.BlockSpec((feat_dim, feat_dim), lambda r, h: (0, 0)),  # ws
                pl.BlockSpec((feat_dim, feat_dim), lambda r, h: (0, 0)),  # wo
                pl.BlockSpec((1, feat_dim), lambda r, h: (0, 0)),       # bp
                pl.BlockSpec((feat_dim, rel_pad), lambda r, h: (0, 0)),  # wr (padded)
                pl.BlockSpec((1, rel_pad), lambda r, h: (0, 0)),        # br
            ],
            out_specs=pl.BlockSpec((r_tile, rel_pad), lambda r, h: (r, 0)),
            scratch_shapes=[pltpu.VMEM((r_tile, c_in), jnp.float32),
                            pltpu.VMEM((r_tile, 1), jnp.float32)],
        ),
        compiler_params=_COMPILER_PARAMS,
    )(uboxes_p, yy, xx, featT, pair_p, roif_bf16,
      uw1, ub1, uw2, ub2, ws, wo, bp, wr, br)


# --------------------------------------------------------------------------
# The module (deterministic synthetic parameters).
# --------------------------------------------------------------------------
class SceneGraphHeadWithGrammarPallas:
    LANE = 128   # pad small class dims to lane width for dense stores

    def __init__(self, key, in_channels, hidden, feat_dim, num_obj_classes, num_rel_classes):
        ks = jax.random.split(key, 10)
        s = 0.2
        self.num_obj = num_obj_classes
        self.num_rel = num_rel_classes
        obj_pad = _round_up(num_obj_classes, self.LANE)
        rel_pad = _round_up(num_rel_classes, self.LANE)

        def init_w(k, shape):
            return (s * jax.random.normal(k, shape, dtype=jnp.float32)).astype(jnp.bfloat16)

        # box_feature_extractor FC head (bf16 weights, f32 biases)
        self.bw1 = init_w(ks[0], (in_channels, hidden))
        self.bb1 = jnp.zeros((1, hidden), jnp.float32)
        self.bw2 = init_w(ks[1], (hidden, feat_dim))
        self.bb2 = jnp.zeros((1, feat_dim), jnp.float32)
        # union_feature_extractor FC head
        self.uw1 = init_w(ks[2], (in_channels, hidden))
        self.ub1 = jnp.zeros((1, hidden), jnp.float32)
        self.uw2 = init_w(ks[3], (hidden, feat_dim))
        self.ub2 = jnp.zeros((1, feat_dim), jnp.float32)
        # predictor: object classifier (padded to 128 lanes)
        cw = init_w(ks[4], (feat_dim, num_obj_classes))
        self.cw = jnp.pad(cw, ((0, 0), (0, obj_pad - num_obj_classes)))
        self.cb = jnp.zeros((1, obj_pad), jnp.float32)
        # predictor: relation branch
        self.ws = init_w(ks[5], (feat_dim, feat_dim))
        self.wo = init_w(ks[6], (feat_dim, feat_dim))
        self.bp = jnp.zeros((1, feat_dim), jnp.float32)
        wr = init_w(ks[7], (feat_dim, num_rel_classes))
        self.wr = jnp.pad(wr, ((0, 0), (0, rel_pad - num_rel_classes)))
        self.br = jnp.zeros((1, rel_pad), jnp.float32)

    def __call__(self, features, boxes, rel_pair_idxs):
        """
        features      : (1, C, H, W)  single-level feature map, NCHW
        boxes         : (N, 4)        x1,y1,x2,y2 in feature-grid coordinates
        rel_pair_idxs : (R, 2) int32  subject / object indices into boxes
        """
        _, c, h, w = features.shape
        hw = h * w

        # HW tiling (chip-conditional tile size, reduction axis).
        hw_tile = _preferred_hw_tile()
        hw_pad = _round_up(hw, 128)
        hw_tile = min(hw_tile, hw_pad)
        hw_pad = _round_up(hw_pad, hw_tile)

        featT = features[0].reshape(c, hw).T                          # (HW, C)
        featT = jnp.pad(featT, ((0, hw_pad - hw), (0, 0))).astype(jnp.bfloat16)
        ys = jnp.arange(hw, dtype=jnp.float32) // w
        xs = jnp.arange(hw, dtype=jnp.float32) % w
        yy = jnp.pad(ys, (0, hw_pad - hw), constant_values=-1e9).reshape(1, hw_pad)
        xx = jnp.pad(xs, (0, hw_pad - hw), constant_values=-1e9).reshape(1, hw_pad)

        # --- box path (fused pool + FC head + classifier) ---
        n = boxes.shape[0]
        n_pad, n_tile = _row_tiling(n, 256)
        boxes_p = jnp.pad(boxes.astype(jnp.float32), ((0, n_pad - n), (0, 0)))
        roi_pad, roi_bf16_pad, refine_pad = box_path(
            boxes_p, yy, xx, featT,
            self.bw1, self.bb1, self.bw2, self.bb2, self.cw, self.cb,
            n_tile=n_tile, hw_tile=hw_tile)
        roi_features = roi_pad[:n]                                    # (N, feat_dim) f32
        refine_logits = refine_pad[:n, :self.num_obj]                 # (N, num_obj)

        # --- union boxes (tiny R x 4 glue; heavy mask is built in-kernel) ---
        r = rel_pair_idxs.shape[0]
        subj_boxes = jnp.take(boxes, rel_pair_idxs[:, 0], axis=0)
        obj_boxes = jnp.take(boxes, rel_pair_idxs[:, 1], axis=0)
        union_boxes = jnp.concatenate(
            [jnp.minimum(subj_boxes[:, :2], obj_boxes[:, :2]),
             jnp.maximum(subj_boxes[:, 2:], obj_boxes[:, 2:])], axis=-1)

        r_pad, r_tile = _row_tiling(r, 256)
        union_boxes_p = jnp.pad(union_boxes.astype(jnp.float32), ((0, r_pad - r), (0, 0)))
        pair_p = jnp.pad(rel_pair_idxs.astype(jnp.int32), ((0, r_pad - r), (0, 0)))

        rel_pad_out = rel_path(
            union_boxes_p, yy, xx, featT, pair_p, roi_bf16_pad,
            self.uw1, self.ub1, self.uw2, self.ub2,
            self.ws, self.wo, self.bp, self.wr, self.br,
            r_tile=r_tile, hw_tile=hw_tile)
        relation_logits = rel_pad_out[:r, :self.num_rel]              # (R, num_rel)

        # inference-style return (losses not computed, see TODOs at top)
        return roi_features, (relation_logits, refine_logits, rel_pair_idxs), {}


# --------------------------------------------------------------------------
# Pure-JAX reference (mirrors the kernel's bf16 MXU-input discipline).
# --------------------------------------------------------------------------
def _bdot(a, b):
    return jnp.dot(a.astype(jnp.bfloat16), b.astype(jnp.bfloat16),
                   preferred_element_type=jnp.float32)


def _reference(head, features, boxes, rel_pair_idxs):
    _, c, h, w = features.shape
    hw = h * w
    featT = features[0].reshape(c, hw).T
    ys = (jnp.arange(hw, dtype=jnp.float32) // w)[None, :]
    xs = (jnp.arange(hw, dtype=jnp.float32) % w)[None, :]

    def pool(bxs):
        x1, y1, x2, y2 = bxs[:, 0:1], bxs[:, 1:2], bxs[:, 2:3], bxs[:, 3:4]
        m = (xs >= x1) & (xs < x2) & (ys >= y1) & (ys < y2)
        cnt = jnp.maximum(m.astype(jnp.float32).sum(-1, keepdims=True), 1.0)
        return _bdot(m.astype(jnp.float32), featT) / cnt

    def mlp(x, w1, b1, w2, b2):
        hh = jnp.maximum(_bdot(x, w1) + b1, 0.0)
        return jnp.maximum(_bdot(hh, w2) + b2, 0.0)

    pooled = pool(boxes)
    roi = mlp(pooled, head.bw1, head.bb1, head.bw2, head.bb2)
    refine = (_bdot(roi, head.cw) + head.cb)[:, :head.num_obj]

    sb = jnp.take(boxes, rel_pair_idxs[:, 0], axis=0)
    ob = jnp.take(boxes, rel_pair_idxs[:, 1], axis=0)
    ub = jnp.concatenate([jnp.minimum(sb[:, :2], ob[:, :2]),
                          jnp.maximum(sb[:, 2:], ob[:, 2:])], axis=-1)
    uf = mlp(pool(ub), head.uw1, head.ub1, head.uw2, head.ub2)

    subj = jnp.take(roi, rel_pair_idxs[:, 0], axis=0)
    obj = jnp.take(roi, rel_pair_idxs[:, 1], axis=0)
    prod = jnp.maximum(_bdot(subj, head.ws) + _bdot(obj, head.wo) + head.bp, 0.0)
    rel = (_bdot(prod * uf, head.wr) + head.br)[:, :head.num_rel]
    return roi, refine, rel


if __name__ == "__main__":
    key = jax.random.PRNGKey(0)
    k_feat, k_box, k_param = jax.random.split(key, 3)

    # Small shapes consistent with the module's forward.
    C, H, W = 32, 16, 16
    N = 8                       # number of proposal boxes
    hidden, feat_dim = 128, 128
    num_obj_classes, num_rel_classes = 16, 32

    features = jax.random.normal(k_feat, (1, C, H, W), dtype=jnp.float32)

    # Deterministic valid boxes in feature-grid coords.
    centers = jax.random.uniform(k_box, (N, 2), minval=3.0, maxval=13.0)
    half = jnp.full((N, 2), 3.0)
    boxes = jnp.concatenate([centers - half, centers + half], axis=-1)  # (N, 4)

    # All ordered pairs i != j  (== samp_processor.prepare_test_pairs)
    ii, jj = jnp.meshgrid(jnp.arange(N), jnp.arange(N), indexing="ij")
    keep = ii.reshape(-1) != jj.reshape(-1)
    rel_pair_idxs = jnp.stack(
        [ii.reshape(-1)[keep], jj.reshape(-1)[keep]], axis=-1).astype(jnp.int32)  # (56, 2)

    head = SceneGraphHeadWithGrammarPallas(
        k_param, C, hidden, feat_dim, num_obj_classes, num_rel_classes)

    roi_features, (relation_logits, refine_logits, pairs), losses = head(
        features, boxes, rel_pair_idxs)
    jax.block_until_ready((roi_features, relation_logits, refine_logits))

    assert roi_features.shape == (N, feat_dim)
    assert refine_logits.shape == (N, num_obj_classes)
    assert relation_logits.shape == (rel_pair_idxs.shape[0], num_rel_classes)

    # Correctness check vs pure-JAX reference (same bf16 MXU-input discipline).
    ref_roi, ref_refine, ref_rel = _reference(head, features, boxes, rel_pair_idxs)
    assert bool(jnp.allclose(roi_features, ref_roi, atol=3e-2, rtol=5e-2)), \
        f"roi mismatch {jnp.max(jnp.abs(roi_features - ref_roi))}"
    assert bool(jnp.allclose(refine_logits, ref_refine, atol=3e-2, rtol=5e-2)), \
        f"refine mismatch {jnp.max(jnp.abs(refine_logits - ref_refine))}"
    assert bool(jnp.allclose(relation_logits, ref_rel, atol=3e-2, rtol=5e-2)), \
        f"relation mismatch {jnp.max(jnp.abs(relation_logits - ref_rel))}"

    print("KERNEL_OK")
</pallas_src>

<mosaic_0001>
module attributes {stable_mosaic.version = 11 : i64} {
  func.func @_box_path_kernel(%arg0: i32, %arg1: i32, %arg2: memref<8x4xf32, #tpu.memory_space<vmem>>, %arg3: memref<1x256xf32, #tpu.memory_space<vmem>>, %arg4: memref<1x256xf32, #tpu.memory_space<vmem>>, %arg5: memref<256x32xbf16, #tpu.memory_space<vmem>>, %arg6: memref<32x128xbf16, #tpu.memory_space<vmem>>, %arg7: memref<1x128xf32, #tpu.memory_space<vmem>>, %arg8: memref<128x128xbf16, #tpu.memory_space<vmem>>, %arg9: memref<1x128xf32, #tpu.memory_space<vmem>>, %arg10: memref<128x128xbf16, #tpu.memory_space<vmem>>, %arg11: memref<1x128xf32, #tpu.memory_space<vmem>>, %arg12: memref<8x128xf32, #tpu.memory_space<vmem>>, %arg13: memref<8x128xbf16, #tpu.memory_space<vmem>>, %arg14: memref<8x128xf32, #tpu.memory_space<vmem>>, %arg15: memref<8x32xf32, #tpu.memory_space<vmem>>, %arg16: memref<8x1xf32, #tpu.memory_space<vmem>>) attributes {dimension_semantics = [#tpu.dimension_semantics<parallel>, #tpu.dimension_semantics<arbitrary>], iteration_bounds = array<i64: 1, 1>, scalar_prefetch = 0 : i64, scratch_operands = 2 : i64, tpu.core_type = #tpu.core_type<tc>, window_params = [{transform_indices = @transform_0, window_bounds = array<i64: 8, 4>}, {transform_indices = @transform_1, window_bounds = array<i64: 1, 256>}, {transform_indices = @transform_2, window_bounds = array<i64: 1, 256>}, {transform_indices = @transform_3, window_bounds = array<i64: 256, 32>}, {pipeline_mode = #tpu.pipeline_mode<synchronous>, transform_indices = @transform_4, window_bounds = array<i64: 32, 128>}, {pipeline_mode = #tpu.pipeline_mode<synchronous>, transform_indices = @transform_5, window_bounds = array<i64: 1, 128>}, {pipeline_mode = #tpu.pipeline_mode<synchronous>, transform_indices = @transform_6, window_bounds = array<i64: 128, 128>}, {pipeline_mode = #tpu.pipeline_mode<synchronous>, transform_indices = @transform_7, window_bounds = array<i64: 1, 128>}, {pipeline_mode = #tpu.pipeline_mode<synchronous>, transform_indices = @transform_8, window_bounds = array<i64: 128, 128>}, {pipeline_mode = #tpu.pipeline_mode<synchronous>, transform_indices = @transform_9, window_bounds = array<i64: 1, 128>}, {transform_indices = @transform_10, window_bounds = array<i64: 8, 128>}, {transform_indices = @transform_11, window_bounds = array<i64: 8, 128>}, {transform_indices = @transform_12, window_bounds = array<i64: 8, 128>}]} {
    %c0_i32 = arith.constant 0 : i32
    %0 = arith.cmpi eq, %arg1, %c0_i32 : i32
    %1 = arith.extui %0 : i1 to i32
    %c0_i32_0 = arith.constant 0 : i32
    %2 = arith.cmpi ne, %1, %c0_i32_0 : i32
    scf.if %2 {
      %cst_19 = arith.constant 0.000000e+00 : f32
      %41 = vector.broadcast %cst_19 : f32 to vector<8x32xf32>
      %c0_20 = arith.constant 0 : index
      %c0_21 = arith.constant 0 : index
      %42 = vector.load %arg15[%c0_20, %c0_21] : memref<8x32xf32, #tpu.memory_space<vmem>>, vector<8x32xf32>
      tpu.vector_store %arg15[%c0_20, %c0_21], %41 {strides = array<i32>} : memref<8x32xf32, #tpu.memory_space<vmem>>, vector<8x32xf32>,
      %cst_22 = arith.constant 0.000000e+00 : f32
      %43 = vector.broadcast %cst_22 : f32 to vector<8x1xf32>
      %c0_23 = arith.constant 0 : index
      %c0_24 = arith.constant 0 : index
      %44 = vector.load %arg16[%c0_23, %c0_24] : memref<8x1xf32, #tpu.memory_space<vmem>>, vector<8x1xf32>
      tpu.vector_store %arg16[%c0_23, %c0_24], %43 {strides = array<i32>} : memref<8x1xf32, #tpu.memory_space<vmem>>, vector<8x1xf32>,
    } else {
    }
    %c0 = arith.constant 0 : index
    %c0_1 = arith.constant 0 : index
    %3 = vector.load %arg2[%c0, %c0_1] : memref<8x4xf32, #tpu.memory_space<vmem>>, vector<8x4xf32>
    %4 = vector.extract_strided_slice %3 {offsets = [0, 0], sizes = [8, 1], strides = [1, 1]} : vector<8x4xf32> to vector<8x1xf32>
    %5 = vector.extract_strided_slice %3 {offsets = [0, 1], sizes = [8, 1], strides = [1, 1]} : vector<8x4xf32> to vector<8x1xf32>
    %6 = vector.extract_strided_slice %3 {offsets = [0, 2], sizes = [8, 1], strides = [1, 1]} : vector<8x4xf32> to vector<8x1xf32>
    %7 = vector.extract_strided_slice %3 {offsets = [0, 3], sizes = [8, 1], strides = [1, 1]} : vector<8x4xf32> to vector<8x1xf32>
    %c0_2 = arith.constant 0 : index
    %c0_3 = arith.constant 0 : index
    %8 = vector.load %arg4[%c0_2, %c0_3] : memref<1x256xf32, #tpu.memory_space<vmem>>, vector<1x256xf32>
    %c0_4 = arith.constant 0 : index
    %c0_5 = arith.constant 0 : index
    %9 = vector.load %arg3[%c0_4, %c0_5] : memref<1x256xf32, #tpu.memory_space<vmem>>, vector<1x256xf32>
    %10 = vector.broadcast %8 : vector<1x256xf32> to vector<8x256xf32>
    %11 = vector.broadcast %4 : vector<8x1xf32> to vector<8x256xf32>
    %12 = arith.cmpf oge, %10, %11 : vector<8x256xf32>
    %13 = vector.broadcast %8 : vector<1x256xf32> to vector<8x256xf32>
    %14 = vector.broadcast %6 : vector<8x1xf32> to vector<8x256xf32>
    %15 = arith.cmpf olt, %13, %14 : vector<8x256xf32>
    %16 = arith.andi %12, %15 : vector<8x256xi1>
    %17 = vector.broadcast %9 : vector<1x256xf32> to vector<8x256xf32>
    %18 = vector.broadcast %5 : vector<8x1xf32> to vector<8x256xf32>
    %19 = arith.cmpf oge, %17, %18 : vector<8x256xf32>
    %20 = arith.andi %16, %19 : vector<8x256xi1>
    %21 = vector.broadcast %9 : vector<1x256xf32> to vector<8x256xf32>
    %22 = vector.broadcast %7 : vector<8x1xf32> to vector<8x256xf32>
    %23 = arith.cmpf olt, %21, %22 : vector<8x256xf32>
    %24 = arith.andi %20, %23 : vector<8x256xi1>
    %25 = arith.extui %24 : vector<8x256xi1> to vector<8x256xi32>
    %26 = arith.sitofp %25 : vector<8x256xi32> to vector<8x256xf32>
    %c0_6 = arith.constant 0 : index
    %c0_7 = arith.constant 0 : index
    %27 = vector.load %arg16[%c0_6, %c0_7] : memref<8x1xf32, #tpu.memory_space<vmem>>, vector<8x1xf32>
    %cst = arith.constant dense<0.000000e+00> : vector<8xf32>
    %28 = vector.multi_reduction <add>, %26, %cst [1] : vector<8x256xf32> to vector<8xf32>
    %29 = vector.shape_cast %28 : vector<8xf32> to vector<8x1xf32>
    %30 = arith.addf %27, %29 : vector<8x1xf32>
    %c0_8 = arith.constant 0 : index
    %c0_9 = arith.constant 0 : index
    %31 = vector.load %arg16[%c0_8, %c0_9] : memref<8x1xf32, #tpu.memory_space<vmem>>, vector<8x1xf32>
    tpu.vector_store %arg16[%c0_8, %c0_9], %30 {strides = array<i32>} : memref<8x1xf32, #tpu.memory_space<vmem>>, vector<8x1xf32>,
    %c0_10 = arith.constant 0 : index
    %c0_11 = arith.constant 0 : index
    %32 = vector.load %arg15[%c0_10, %c0_11] : memref<8x32xf32, #tpu.memory_space<vmem>>, vector<8x32xf32>
    %33 = arith.truncf %26 : vector<8x256xf32> to vector<8x256xbf16>
    %c0_12 = arith.constant 0 : index
    %c0_13 = arith.constant 0 : index
    %34 = vector.load %arg5[%c0_12, %c0_13] : memref<256x32xbf16, #tpu.memory_space<vmem>>, vector<256x32xbf16>
    %cst_14 = arith.constant dense<0.000000e+00> : vector<8x32xf32>
    %35 = tpu.matmul %33, %34, %cst_14 {dimension_numbers = #tpu.dot_dimension_numbers<[1], [0], [0], [1], [0, 0, 1, 1], [], []>} : vector<8x256xbf16>, vector<256x32xbf16>, vector<8x32xf32> -> vector<8x32xf32>
    %36 = arith.addf %32, %35 : vector<8x32xf32>
    %c0_15 = arith.constant 0 : index
    %c0_16 = arith.constant 0 : index
    %37 = vector.load %arg15[%c0_15, %c0_16] : memref<8x32xf32, #tpu.memory_space<vmem>>, vector<8x32xf32>
    tpu.vector_store %arg15[%c0_15, %c0_16], %36 {strides = array<i32>} : memref<8x32xf32, #tpu.memory_space<vmem>>, vector<8x32xf32>,
    %c0_i32_17 = arith.constant 0 : i32
    %38 = arith.cmpi eq, %arg1, %c0_i32_17 : i32
    %39 = arith.extui %38 : i1 to i32
    %c0_i32_18 = arith.constant 0 : i32
    %40 = arith.cmpi ne, %39, %c0_i32_18 : i32
    scf.if %40 {
      %c0_19 = arith.constant 0 : index
      %c0_20 = arith.constant 0 : index
      %41 = vector.load %arg16[%c0_19, %c0_20] : memref<8x1xf32, #tpu.memory_space<vmem>>, vector<8x1xf32>
      %cst_21 = arith.constant 1.000000e+00 : f32
      %42 = vector.broadcast %cst_21 : f32 to vector<8x1xf32>
      %43 = arith.maximumf %41, %42 : vector<8x1xf32>
      %44 = tpu.reciprocal %43 {approx = true} : vector<8x1xf32> -> vector<8x1xf32>
      %c0_22 = arith.constant 0 : index
      %c0_23 = arith.constant 0 : index
      %45 = vector.load %arg15[%c0_22, %c0_23] : memref<8x32xf32, #tpu.memory_space<vmem>>, vector<8x32xf32>
      %46 = vector.broadcast %44 : vector<8x1xf32> to vector<8x32xf32>
      %47 = arith.mulf %45, %46 : vector<8x32xf32>
      %48 = arith.truncf %47 : vector<8x32xf32> to vector<8x32xbf16>
      %c0_24 = arith.constant 0 : index
      %c0_25 = arith.constant 0 : index
      %49 = vector.load %arg6[%c0_24, %c0_25] : memref<32x128xbf16, #tpu.memory_space<vmem>>, vector<32x128xbf16>
      %cst_26 = arith.constant dense<0.000000e+00> : vector<8x128xf32>
      %50 = tpu.matmul %48, %49, %cst_26 {dimension_numbers = #tpu.dot_dimension_numbers<[1], [0], [0], [1], [0, 0, 1, 1], [], []>} : vector<8x32xbf16>, vector<32x128xbf16>, vector<8x128xf32> -> vector<8x128xf32>
      %c0_27 = arith.constant 0 : index
      %c0_28 = arith.constant 0 : index
      %51 = vector.load %arg7[%c0_27, %c0_28] : memref<1x128xf32, #tpu.memory_space<vmem>>, vector<1x128xf32>
      %52 = vector.broadcast %51 : vector<1x128xf32> to vector<8x128xf32>
      %53 = arith.addf %50, %52 : vector<8x128xf32>
      %cst_29 = arith.constant 0.000000e+00 : f32
      %54 = vector.broadcast %cst_29 : f32 to vector<8x128xf32>
      %55 = arith.maximumf %53, %54 : vector<8x128xf32>
      %56 = arith.truncf %55 : vector<8x128xf32> to vector<8x128xbf16>
      %c0_30 = arith.constant 0 : index
      %c0_31 = arith.constant 0 : index
      %57 = vector.load %arg8[%c0_30, %c0_31] : memref<128x128xbf16, #tpu.memory_space<vmem>>, vector<128x128xbf16>
      %cst_32 = arith.constant dense<0.000000e+00> : vector<8x128xf32>
      %58 = tpu.matmul %56, %57, %cst_32 {dimension_numbers = #tpu.dot_dimension_numbers<[1], [0], [0], [1], [0, 0, 1, 1], [], []>} : vector<8x128xbf16>, vector<128x128xbf16>, vector<8x128xf32> -> vector<8x128xf32>
      %c0_33 = arith.constant 0 : index
      %c0_34 = arith.constant 0 : index
      %59 = vector.load %arg9[%c0_33, %c0_34] : memref<1x128xf32, #tpu.memory_space<vmem>>, vector<1x128xf32>
      %60 = vector.broadcast %59 : vector<1x128xf32> to vector<8x128xf32>
      %61 = arith.addf %58, %60 : vector<8x128xf32>
      %cst_35 = arith.constant 0.000000e+00 : f32
      %62 = vector.broadcast %cst_35 : f32 to vector<8x128xf32>
      %63 = arith.maximumf %61, %62 : vector<8x128xf32>
      %c0_36 = arith.constant 0 : index
      %c0_37 = arith.constant 0 : index
      %64 = vector.load %arg12[%c0_36, %c0_37] : memref<8x128xf32, #tpu.memory_space<vmem>>, vector<8x128xf32>
      tpu.vector_store %arg12[%c0_36, %c0_37], %63 {strides = array<i32>} : memref<8x128xf32, #tpu.memory_space<vmem>>, vector<8x128xf32>,
      %65 = arith.truncf %63 : vector<8x128xf32> to vector<8x128xbf16>
      %c0_38 = arith.constant 0 : index
      %c0_39 = arith.constant 0 : index
      %66 = vector.load %arg13[%c0_38, %c0_39] : memref<8x128xbf16, #tpu.memory_space<vmem>>, vector<8x128xbf16>
      tpu.vector_store %arg13[%c0_38, %c0_39], %65 {strides = array<i32>} : memref<8x128xbf16, #tpu.memory_space<vmem>>, vector<8x128xbf16>,
      %67 = arith.truncf %63 : vector<8x128xf32> to vector<8x128xbf16>
      %c0_40 = arith.constant 0 : index
      %c0_41 = arith.constant 0 : index
      %68 = vector.load %arg10[%c0_40, %c0_41] : memref<128x128xbf16, #tpu.memory_space<vmem>>, vector<128x128xbf16>
      %cst_42 = arith.constant dense<0.000000e+00> : vector<8x128xf32>
      %69 = tpu.matmul %67, %68, %cst_42 {dimension_numbers = #tpu.dot_dimension_numbers<[1], [0], [0], [1], [0, 0, 1, 1], [], []>} : vector<8x128xbf16>, vector<128x128xbf16>, vector<8x128xf32> -> vector<8x128xf32>
      %c0_43 = arith.constant 0 : index
      %c0_44 = arith.constant 0 : index
      %70 = vector.load %arg11[%c0_43, %c0_44] : memref<1x128xf32, #tpu.memory_space<vmem>>, vector<1x128xf32>
      %71 = vector.broadcast %70 : vector<1x128xf32> to vector<8x128xf32>
      %72 = arith.addf %69, %71 : vector<8x128xf32>
      %c0_45 = arith.constant 0 : index
      %c0_46 = arith.constant 0 : index
      %73 = vector.load %arg14[%c0_45, %c0_46] : memref<8x128xf32, #tpu.memory_space<vmem>>, vector<8x128xf32>
      tpu.vector_store %arg14[%c0_45, %c0_46], %72 {strides = array<i32>} : memref<8x128xf32, #tpu.memory_space<vmem>>, vector<8x128xf32>,
    } else {
    }
    return
  }
  func.func @transform_0(%arg0: i32, %arg1: i32) -> (i32, i32) {
    %c0_i32 = arith.constant 0 : i32
    %c0_i32_0 = arith.constant 0 : i32
    return %arg0, %c0_i32 : i32, i32
  }
  func.func @transform_1(%arg0: i32, %arg1: i32) -> (i32, i32) {
    %c0_i32 = arith.constant 0 : i32
    %c0_i32_0 = arith.constant 0 : i32
    return %c0_i32, %arg1 : i32, i32
  }
  func.func @transform_2(%arg0: i32, %arg1: i32) -> (i32, i32) {
    %c0_i32 = arith.constant 0 : i32
    %c0_i32_0 = arith.constant 0 : i32
    return %c0_i32, %arg1 : i32, i32
  }
  func.func @transform_3(%arg0: i32, %arg1: i32) -> (i32, i32) {
    %c0_i32 = arith.constant 0 : i32
    %c0_i32_0 = arith.constant 0 : i32
    return %arg1, %c0_i32 : i32, i32
  }
  func.func @transform_4(%arg0: i32, %arg1: i32) -> (i32, i32) {
    %c0_i32 = arith.constant 0 : i32
    %c0_i32_0 = arith.constant 0 : i32
    %c0_i32_1 = arith.constant 0 : i32
    return %c0_i32, %c0_i32_0 : i32, i32
  }
  func.func @transform_5(%arg0: i32, %arg1: i32) -> (i32, i32) {
    %c0_i32 = arith.constant 0 : i32
    %c0_i32_0 = arith.constant 0 : i32
    %c0_i32_1 = arith.constant 0 : i32
    return %c0_i32, %c0_i32_0 : i32, i32
  }
  func.func @transform_6(%arg0: i32, %arg1: i32) -> (i32, i32) {
    %c0_i32 = arith.constant 0 : i32
    %c0_i32_0 = arith.constant 0 : i32
    %c0_i32_1 = arith.constant 0 : i32
    return %c0_i32, %c0_i32_0 : i32, i32
  }
  func.func @transform_7(%arg0: i32, %arg1: i32) -> (i32, i32) {
    %c0_i32 = arith.constant 0 : i32
    %c0_i32_0 = arith.constant 0 : i32
    %c0_i32_1 = arith.constant 0 : i32
    return %c0_i32, %c0_i32_0 : i32, i32
  }
  func.func @transform_8(%arg0: i32, %arg1: i32) -> (i32, i32) {
    %c0_i32 = arith.constant 0 : i32
    %c0_i32_0 = arith.constant 0 : i32
    %c0_i32_1 = arith.constant 0 : i32
    return %c0_i32, %c0_i32_0 : i32, i32
  }
  func.func @transform_9(%arg0: i32, %arg1: i32) -> (i32, i32) {
    %c0_i32 = arith.constant 0 : i32
    %c0_i32_0 = arith.constant 0 : i32
    %c0_i32_1 = arith.constant 0 : i32
    return %c0_i32, %c0_i32_0 : i32, i32
  }
  func.func @transform_10(%arg0: i32, %arg1: i32) -> (i32, i32) {
    %c0_i32 = arith.constant 0 : i32
    %c0_i32_0 = arith.constant 0 : i32
    return %arg0, %c0_i32 : i32, i32
  }
  func.func @transform_11(%arg0: i32, %arg1: i32) -> (i32, i32) {
    %c0_i32 = arith.constant 0 : i32
    %c0_i32_0 = arith.constant 0 : i32
    return %arg0, %c0_i32 : i32, i32
  }
  func.func @transform_12(%arg0: i32, %arg1: i32) -> (i32, i32) {
    %c0_i32 = arith.constant 0 : i32
    %c0_i32_0 = arith.constant 0 : i32
    return %arg0, %c0_i32 : i32, i32
  }
}

</mosaic_0001>

<llo_original>
// kernel: tpu_custom_call.1
$region0: #{tpu_custom_call.1}
  #allocation0 [shape = 'u32[]', space=smem, size = 0x4, offset = 0x4, fixed_abs, tag = 'smem constant byte address 0x4 - core index']
  #allocation1 [shape = 'u32[144,128]{1,0:T(1,128)}', space=vmem, size = 0x12000, scoped, tag = 'internal scratch']
  #allocation2 [shape = 'f32[8,32]{1,0:T(8,128)}', space=vmem, size = 0x1000, scoped, tag = 'scratch operand']
  #allocation3 [shape = 'f32[8,1]{1,0:T(8,128)}', space=vmem, size = 0x1000, scoped, tag = 'scratch operand']
  %s0 = inlined_call_operand.vmem [shape: f32[8,4], index: 0, kind: input, shape index: {}]
  %s1 = inlined_call_operand.vmem [shape: f32[1,256], index: 1, kind: input, shape index: {}]
  %s2 = inlined_call_operand.vmem [shape: f32[1,256], index: 2, kind: input, shape index: {}]
  %s3 = inlined_call_operand.vmem [shape: bf16[256,32], index: 3, kind: input, shape index: {}]
  %s4 = inlined_call_operand.vmem [shape: bf16[32,128], index: 4, kind: input, shape index: {}]
  %s5 = inlined_call_operand.vmem [shape: f32[1,128], index: 5, kind: input, shape index: {}]
  %s6 = inlined_call_operand.vmem [shape: bf16[128,128], index: 6, kind: input, shape index: {}]
  %s7 = inlined_call_operand.vmem [shape: f32[1,128], index: 7, kind: input, shape index: {}]
  %s8 = inlined_call_operand.vmem [shape: bf16[128,128], index: 8, kind: input, shape index: {}]
  %s9 = inlined_call_operand.vmem [shape: f32[1,128], index: 9, kind: input, shape index: {}]
  %s10 = inlined_call_operand.hbm [shape: f32[8,128], index: 10, kind: output, shape index: {0}]
  %s11 = inlined_call_operand.hbm [shape: bf16[8,128], index: 11, kind: output, shape index: {1}]
  %s12 = inlined_call_operand.hbm [shape: f32[8,128], index: 12, kind: output, shape index: {2}]
  %13 = xla_tuple %s10, %s11, %s12
  %s14 = sld [smem:[#allocation0]]
  $region74: #{tpu_custom_call.1} parent=0
    _
  %s16 = ssub.s32 1, %s14
  %s17 = scalar_select 0, %s16, %s14
  $region1: #{tpu_custom_call.1} parent=0
    #allocation4 [shape = 'u8[4096]{0}', space=vmem, size = 0x1000, scoped, tag = 'output window, operand 0, single buffered']
    #allocation5 [shape = 's32[1]{0}', space=sflag, size = 0x4, scoped, tag = 'scoped memory for tpu_custom_call.1']
    #allocation6 [shape = 'u8[2048]{0}', space=vmem, size = 0x800, scoped, tag = 'output window, operand 1, single buffered']
    #allocation7 [shape = 's32[1]{0}', space=sflag, size = 0x4, scoped, tag = 'scoped memory for tpu_custom_call.1']
    #allocation8 [shape = 'u8[4096]{0}', space=vmem, size = 0x1000, scoped, tag = 'output window, operand 2, single buffered']
    %18 = vsyncpa [#allocation5], 0
    %19 = vsyncpa [#allocation7], 0
    // Predicated region
    $region2: #{tpu_custom_call.1} parent=1 // pred_check
      _
    $region3: #{tpu_custom_call.1} parent=1 // pred_check_branch
      %21 = sbr.rel (0) target = $region5
    $region4: #{tpu_custom_call.1} parent=1 // pred_region
      _
    $region5: #{tpu_custom_call.1} parent=1 // pred_fallthru
      _
    // Predicated region
    $region6: #{tpu_custom_call.1} parent=1 // pred_check
      _
    $region7: #{tpu_custom_call.1} parent=1 // pred_check_branch
      %23 = sbr.rel (0) target = $region9
    $region8: #{tpu_custom_call.1} parent=1 // pred_region
      _
    $region9: #{tpu_custom_call.1} parent=1 // pred_fallthru
      _
    // Predicated region
    $region10: #{tpu_custom_call.1} parent=1 // pred_check
      _
    $region11: #{tpu_custom_call.1} parent=1 // pred_check_branch
      %25 = sbr.rel (0) target = $region13
    $region12: #{tpu_custom_call.1} parent=1 // pred_region
      _
    $region13: #{tpu_custom_call.1} parent=1 // pred_fallthru
      _
    // Predicated region
    $region14: #{tpu_custom_call.1} parent=1 // pred_check
      _
    $region15: #{tpu_custom_call.1} parent=1 // pred_check_branch
      %27 = sbr.rel (0) target = $region17
    $region16: #{tpu_custom_call.1} parent=1 // pred_region
      _
    $region17: #{tpu_custom_call.1} parent=1 // pred_fallthru
      _
    // Predicated region
    $region18: #{tpu_custom_call.1} parent=1 // pred_check
      _
    $region19: #{tpu_custom_call.1} parent=1 // pred_check_branch
      %29 = sbr.rel (0) target = $region21
    $region20: #{tpu_custom_call.1} parent=1 // pred_region
      _
    $region21: #{tpu_custom_call.1} parent=1 // pred_fallthru
      _
    // Predicated region
    $region22: #{tpu_custom_call.1} parent=1 // pred_check
      _
    $region23: #{tpu_custom_call.1} parent=1 // pred_check_branch
      %31 = sbr.rel (0) target = $region25
    $region24: #{tpu_custom_call.1} parent=1 // pred_region
      _
    $region25: #{tpu_custom_call.1} parent=1 // pred_fallthru
      _
    // Predicated region
    $region26: #{tpu_custom_call.1} parent=1 // pred_check
      _
    $region27: #{tpu_custom_call.1} parent=1 // pred_check_branch
      %33 = sbr.rel (0) target = $region29
    $region28: #{tpu_custom_call.1} parent=1 // pred_region
      _
    $region29: #{tpu_custom_call.1} parent=1 // pred_fallthru
      _
    // Predicated region
    $region30: #{tpu_custom_call.1} parent=1 // pred_check
      _
    $region31: #{tpu_custom_call.1} parent=1 // pred_check_branch
      %35 = sbr.rel (0) target = $region33
    $region32: #{tpu_custom_call.1} parent=1 // pred_region
      _
    $region33: #{tpu_custom_call.1} parent=1 // pred_fallthru
      _
    // Predicated region
    $region34: #{tpu_custom_call.1} parent=1 // pred_check
      _
    $region35: #{tpu_custom_call.1} parent=1 // pred_check_branch
      %37 = sbr.rel (0) target = $region37
    $region36: #{tpu_custom_call.1} parent=1 // pred_region
      _
    $region37: #{tpu_custom_call.1} parent=1 // pred_fallthru
      _
    // Predicated region
    $region38: #{tpu_custom_call.1} parent=1 // pred_check
      _
    $region39: #{tpu_custom_call.1} parent=1 // pred_check_branch
      %39 = sbr.rel (0) target = $region41
    $region40: #{tpu_custom_call.1} parent=1 // pred_region
      _
    $region41: #{tpu_custom_call.1} parent=1 // pred_fallthru
      _
    %p41 = scmp.eq.s32.totalorder 0, 0
    // Predicated region
    $region42: #{tpu_custom_call.1} parent=1 // pred_check
      %p42 = pneg %p41
    $region43: #{tpu_custom_call.1} parent=1 // pred_check_branch
      %44 = sbr.rel (%p42) target = $region45
    $region44: #{tpu_custom_call.1} parent=1 // pred_region
      %vm45 = vcmask 261120
      %46 = vst.msk [vmem:[#allocation2] sm:$0xff] %vm45, 0.0
      %vm47 = vcmask 7168
      %48 = vst.msk [vmem:[#allocation3] sm:$0xff] %vm47, 0.0
    $region45: #{tpu_custom_call.1} parent=1 // pred_fallthru
      _
    %v49 = vld [vmem:[%s0] sm:$0xff]
    %v50 = vld [vmem:[%s2] sm:$0x3]
    %v51 = vld [vmem:[%s1] sm:$0x3]
    %v53 = vlaneseq
    %v54 = vshrl.u32 %v53, 7
    %v55 = vsub.s32 0, %v54
    %v56 = vrot.slane %v50, %v55
    %v57 = vlaneseq
    %v58 = vshrl.u32 %v57, 7
    %v59 = vsub.s32 1, %v58
    %v60 = vrot.slane %v50, %v59
    %64 = vset.pattern.permute.xlu0 0
    %65 = vperm.xlu0 %64, %v49
    %v66 = vpop.permute.xlu0 %65
    %vm68 = vcmp.ge.f32.partialorder %v56, %v66
    %vm69 = vcmp.ge.f32.partialorder %v60, %v66
    %70 = vset.pattern.permute.xlu0 2
    %71 = vperm.xlu0 %70, %v49
    %v72 = vpop.permute.xlu0 %71
    %vm74 = vcmp.lt.f32.partialorder %v56, %v72
    %vm75 = vcmp.lt.f32.partialorder %v60, %v72
    %vm76 = vmand %vm68, %vm74
    %vm77 = vmand %vm69, %vm75
    %v79 = vlaneseq
    %v80 = vshrl.u32 %v79, 7
    %v81 = vsub.s32 0, %v80
    %v82 = vrot.slane %v51, %v81
    %v83 = vlaneseq
    %v84 = vshrl.u32 %v83, 7
    %v85 = vsub.s32 1, %v84
    %v86 = vrot.slane %v51, %v85
    %89 = vset.pattern.permute.xlu0 1
    %90 = vperm.xlu0 %89, %v49
    %v91 = vpop.permute.xlu0 %90
    %vm93 = vcmp.ge.f32.partialorder %v82, %v91
    %vm94 = vcmp.ge.f32.partialorder %v86, %v91
    %vm95 = vmand %vm76, %vm93
    %vm96 = vmand %vm77, %vm94
    %97 = vset.pattern.permute.xlu0 3
    %98 = vperm.xlu0 %97, %v49
    %v99 = vpop.permute.xlu0 %98
    %vm101 = vcmp.lt.f32.partialorder %v82, %v99
    %vm102 = vcmp.lt.f32.partialorder %v86, %v99
    %vm103 = vmand %vm95, %vm101
    %vm104 = vmand %vm96, %vm102
    %v105 = vsel %vm103, 1, 0
    %v106 = vsel %vm104, 1, 0
    %v107 = vcvt.s32.f32 %v105
    %v108 = vcvt.s32.f32 %v106
    %v109 = vld [vmem:[#allocation3] sm:$0xff]
    %v110 = vadd.f32 %v107, %v108
    %111 = vadd.xlane.f32.xlu0 %v110
    %v112 = vpop.xlane.xlu0 %111
    %v113 = vadd.f32 %v109, %v112
    %vm114 = vcmask 7168
    %115 = vst.msk [vmem:[#allocation3] sm:$0xff] %vm114, %v113
    %v116 = vld [vmem:[#allocation2] sm:$0xff]
    %v117 = vpack.c.bf16 %v107, %v107
    %v118 = vpack.c.bf16 %v108, %v108
    %v119 = vld [vmem:[%s3] sm:$0xf]
    %v120 = vld [vmem:[%s3 + $0x4] sm:$0xf]
    %v121 = vld [vmem:[%s3 + $0x8] sm:$0xf]
    %v122 = vld [vmem:[%s3 + $0xc] sm:$0xf]
    %v123 = vld [vmem:[%s3 + $0x10] sm:$0xf]
    %v124 = vld [vmem:[%s3 + $0x14] sm:$0xf]
    %v125 = vld [vmem:[%s3 + $0x18] sm:$0xf]
    %v126 = vld [vmem:[%s3 + $0x1c] sm:$0xf]
    %v127 = vld [vmem:[%s3 + $0x20] sm:$0xf]
    %v128 = vld [vmem:[%s3 + $0x24] sm:$0xf]
    %v129 = vld [vmem:[%s3 + $0x28] sm:$0xf]
    %v130 = vld [vmem:[%s3 + $0x2c] sm:$0xf]
    %v131 = vld [vmem:[%s3 + $0x30] sm:$0xf]
    %v132 = vld [vmem:[%s3 + $0x34] sm:$0xf]
    %v133 = vld [vmem:[%s3 + $0x38] sm:$0xf]
    %v134 = vld [vmem:[%s3 + $0x3c] sm:$0xf]
    %v135 = vld [vmem:[%s3 + $0x40] sm:$0xf]
    %v136 = vld [vmem:[%s3 + $0x44] sm:$0xf]
    %v137 = vld [vmem:[%s3 + $0x48] sm:$0xf]
    %v138 = vld [vmem:[%s3 + $0x4c] sm:$0xf]
    %v139 = vld [vmem:[%s3 + $0x50] sm:$0xf]
    %v140 = vld [vmem:[%s3 + $0x54] sm:$0xf]
    %v141 = vld [vmem:[%s3 + $0x58] sm:$0xf]
    %v142 = vld [vmem:[%s3 + $0x5c] sm:$0xf]
    %v143 = vld [vmem:[%s3 + $0x60] sm:$0xf]
    %v144 = vld [vmem:[%s3 + $0x64] sm:$0xf]
    %v145 = vld [vmem:[%s3 + $0x68] sm:$0xf]
    %v146 = vld [vmem:[%s3 + $0x6c] sm:$0xf]
    %v147 = vld [vmem:[%s3 + $0x70] sm:$0xf]
    %v148 = vld [vmem:[%s3 + $0x74] sm:$0xf]
    %v149 = vld [vmem:[%s3 + $0x78] sm:$0xf]
    %v150 = vld [vmem:[%s3 + $0x7c] sm:$0xf]
    %v183 = vunpack.c.l.b16 %v119
    %v184 = vunpack.c.l.b16 %v120
    %v185 = vunpack.c.l.b16 %v121
    %v186 = vunpack.c.l.b16 %v122
    %v187 = vunpack.c.l.b16 %v123
    %v188 = vunpack.c.l.b16 %v124
    %v189 = vunpack.c.l.b16 %v125
    %v190 = vunpack.c.l.b16 %v126
    %v191 = vunpack.c.l.b16 %v127
    %v192 = vunpack.c.l.b16 %v128
    %v193 = vunpack.c.l.b16 %v129
    %v194 = vunpack.c.l.b16 %v130
    %v195 = vunpack.c.l.b16 %v131
    %v196 = vunpack.c.l.b16 %v132
    %v197 = vunpack.c.l.b16 %v133
    %v198 = vunpack.c.l.b16 %v134
    %v199 = vunpack.c.l.b16 %v135
    %v200 = vunpack.c.l.b16 %v136
    %v201 = vunpack.c.l.b16 %v137
    %v202 = vunpack.c.l.b16 %v138
    %v203 = vunpack.c.l.b16 %v139
    %v204 = vunpack.c.l.b16 %v140
    %v205 = vunpack.c.l.b16 %v141
    %v206 = vunpack.c.l.b16 %v142
    %v207 = vunpack.c.l.b16 %v143
    %v208 = vunpack.c.l.b16 %v144
    %v209 = vunpack.c.l.b16 %v145
    %v210 = vunpack.c.l.b16 %v146
    %v211 = vunpack.c.l.b16 %v147
    %v212 = vunpack.c.l.b16 %v148
    %v213 = vunpack.c.l.b16 %v149
    %v214 = vunpack.c.l.b16 %v150
    %v215 = vpack.c.b16 %v184, %v183
    %v216 = vpack.c.b16 %v186, %v185
    %v217 = vpack.c.b16 %v188, %v187
    %v218 = vpack.c.b16 %v190, %v189
    %v219 = vpack.c.b16 %v192, %v191
    %v220 = vpack.c.b16 %v194, %v193
    %v221 = vpack.c.b16 %v196, %v195
    %v222 = vpack.c.b16 %v198, %v197
    %v223 = vpack.c.b16 %v200, %v199
    %v224 = vpack.c.b16 %v202, %v201
    %v225 = vpack.c.b16 %v204, %v203
    %v226 = vpack.c.b16 %v206, %v205
    %v227 = vpack.c.b16 %v208, %v207
    %v228 = vpack.c.b16 %v210, %v209
    %v229 = vpack.c.b16 %v212, %v211
    %v230 = vpack.c.b16 %v214, %v213
    %247 = vmatprep.subr.bf16.mxu0 0
    %248 = vmatpush1.bf16.msra.mxu0 %v222
    %249 = vmatprep.subr.bf16.mxu0 0
    %250 = vmatpush1.bf16.msra.mxu0 %v221
    %251 = vmatprep.subr.bf16.mxu0 0
    %252 = vmatpush1.bf16.msra.mxu0 %v220
    %253 = vmatprep.subr.bf16.mxu0 0
    %254 = vmatpush1.bf16.msra.mxu0 %v219
    %255 = vmatprep.subr.bf16.mxu0 0
    %256 = vmatpush1.bf16.msra.mxu0 %v218
    %257 = vmatprep.subr.bf16.mxu0 0
    %258 = vmatpush1.bf16.msra.mxu0 %v217
    %259 = vmatprep.subr.bf16.mxu0 0
    %260 = vmatpush1.bf16.msra.mxu0 %v216
    %261 = vmatprep.subr.bf16.mxu0 0
    %262 = vmatpush1.bf16.msra.mxu0 %v215
    %263 = vmatprep.subr.bf16.mxu0 0
    %264 = vmatpush2.bf16.msra.mxu0 %v230
    %265 = vmatprep.subr.bf16.mxu0 0
    %266 = vmatpush2.bf16.msra.mxu0 %v229
    %267 = vmatprep.subr.bf16.mxu0 0
    %268 = vmatpush2.bf16.msra.mxu0 %v228
    %269 = vmatprep.subr.bf16.mxu0 0
    %270 = vmatpush2.bf16.msra.mxu0 %v227
    %271 = vmatprep.subr.bf16.mxu0 0
    %272 = vmatpush2.bf16.msra.mxu0 %v226
    %273 = vmatprep.subr.bf16.mxu0 0
    %274 = vmatpush2.bf16.msra.mxu0 %v225
    %275 = vmatprep.subr.bf16.mxu0 0
    %276 = vmatpush2.bf16.msra.mxu0 %v224
    %277 = vmatprep.subr.bf16.mxu0 0
    %278 = vmatpush2.bf16.msra.mxu0 %v223
    %279 = vmatprep.mubr.bf16.mxu0 %v118
    %280 = vmatmul.mubr.bf16.gmra.mxu0 %v117
    %v281 = vpop.f32.mrf.mxu0
    %v282 = vadd.f32 0.0, %v281
    %v283 = vpop.f32.mrf.mxu0
    %v284 = vpop.f32.mrf.mxu0
    %v285 = vpop.f32.mrf.mxu0
    %286 = vdwg.mxu0
    %v287 = vadd.f32 %v116, %v282
    %vm288 = vcmask 261120
    %289 = vst.msk [vmem:[#allocation2] sm:$0xff] %vm288, %v287
    // Predicated region
    $region46: #{tpu_custom_call.1} parent=1 // pred_check
      %p290 = pneg %p41
    $region47: #{tpu_custom_call.1} parent=1 // pred_check_branch
      %292 = sbr.rel (%p290) target = $region49
    $region48: #{tpu_custom_call.1} parent=1 // pred_region
      %v293 = vld [vmem:[#allocation3] sm:$0xff]
      %v294 = vmax.f32 %v293, 1.0
      %v295 = vrcp.pop %v294
      %v296 = vld [vmem:[#allocation2] sm:$0xff]
      %298 = vset.pattern.permute.xlu0 0
      %299 = vperm.xlu0 %298, %v295
      %v300 = vpop.permute.xlu0 %299
      %v302 = vmul.f32 %v296, %v300
      %v303 = vpack.c.bf16 %v302, %v302
      %v304 = vld [vmem:[%s4] sm:$0xf]
      %v305 = vld [vmem:[%s4 + $0x4] sm:$0xf]
      %v306 = vld [vmem:[%s4 + $0x8] sm:$0xf]
      %v307 = vld [vmem:[%s4 + $0xc] sm:$0xf]
      %v308 = vld [vmem:[%s5] sm:$0x1]
      %v310 = vlaneseq
      %v311 = vshrl.u32 %v310, 7
      %v312 = vsub.s32 0, %v311
      %v313 = vrot.slane %v308, %v312
      %v319 = vunpack.c.l.b16 %v304
      %v320 = vunpack.c.l.b16 %v305
      %v321 = vunpack.c.l.b16 %v306
      %v322 = vunpack.c.l.b16 %v307
      %v323 = vpack.c.b16 %v320, %v319
      %v324 = vpack.c.b16 %v322, %v321
      %v328 = vsel %vm288, %v303, 0
      %330 = vmatprep.subr.bf16.mxu0 0
      %331 = vmatpush1.bf16.msra.mxu0 0
      %332 = vmatprep.subr.bf16.mxu0 0
      %333 = vmatpush1.bf16.msra.mxu0 0
      %334 = vmatprep.subr.bf16.mxu0 0
      %335 = vmatpush1.bf16.msra.mxu0 0
      %336 = vmatprep.subr.bf16.mxu0 0
      %337 = vmatpush1.bf16.msra.mxu0 0
      %338 = vmatprep.subr.bf16.mxu0 0
      %339 = vmatpush1.bf16.msra.mxu0 0
      %340 = vmatprep.subr.bf16.mxu0 0
      %341 = vmatpush1.bf16.msra.mxu0 0
      %342 = vmatprep.subr.bf16.mxu0 0
      %343 = vmatpush1.bf16.msra.mxu0 %v324
      %344 = vmatprep.subr.bf16.mxu0 0
      %345 = vmatpush1.bf16.msra.mxu0 %v323
      %346 = vmatprep.subr.bf16.mxu0 0
      %347 = vmatpush2.bf16.msra.mxu0 0
      %348 = vmatprep.subr.bf16.mxu0 0
      %349 = vmatpush2.bf16.msra.mxu0 0
      %350 = vmatprep.subr.bf16.mxu0 0
      %351 = vmatpush2.bf16.msra.mxu0 0
      %352 = vmatprep.subr.bf16.mxu0 0
      %353 = vmatpush2.bf16.msra.mxu0 0
      %354 = vmatprep.subr.bf16.mxu0 0
      %355 = vmatpush2.bf16.msra.mxu0 0
      %356 = vmatprep.subr.bf16.mxu0 0
      %357 = vmatpush2.bf16.msra.mxu0 0
      %358 = vmatprep.subr.bf16.mxu0 0
      %359 = vmatpush2.bf16.msra.mxu0 0
      %360 = vmatprep.subr.bf16.mxu0 0
      %361 = vmatpush2.bf16.msra.mxu0 0
      %362 = vmatprep.mubr.bf16.mxu0 0
      %363 = vmatmul.mubr.bf16.gmra.mxu0 %v328
      %v364 = vpop.f32.mrf.mxu0
      %v365 = vadd.f32 %v313, %v364
      %v366 = vpop.f32.mrf.mxu0
      %v367 = vpop.f32.mrf.mxu0
      %v368 = vpop.f32.mrf.mxu0
      %369 = vdwg.mxu0
      %v370 = vmax.f32 %v365, 0.0
      %v371 = vpack.c.bf16 %v370, %v370
      %v372 = vld [vmem:[%s6] sm:$0xf]
      %v373 = vld [vmem:[%s6 + $0x4] sm:$0xf]
      %v374 = vld [vmem:[%s6 + $0x8] sm:$0xf]
      %v375 = vld [vmem:[%s6 + $0xc] sm:$0xf]
      %v376 = vld [vmem:[%s6 + $0x10] sm:$0xf]
      %v377 = vld [vmem:[%s6 + $0x14] sm:$0xf]
      %v378 = vld [vmem:[%s6 + $0x18] sm:$0xf]
      %v379 = vld [vmem:[%s6 + $0x1c] sm:$0xf]
      %v380 = vld [vmem:[%s6 + $0x20] sm:$0xf]
      %v381 = vld [vmem:[%s6 + $0x24] sm:$0xf]
      %v382 = vld [vmem:[%s6 + $0x28] sm:$0xf]
      %v383 = vld [vmem:[%s6 + $0x2c] sm:$0xf]
      %v384 = vld [vmem:[%s6 + $0x30] sm:$0xf]
      %v385 = vld [vmem:[%s6 + $0x34] sm:$0xf]
      %v386 = vld [vmem:[%s6 + $0x38] sm:$0xf]
      %v387 = vld [vmem:[%s6 + $0x3c] sm:$0xf]
      %v388 = vld [vmem:[%s7] sm:$0x1]
      %v390 = vlaneseq
      %v391 = vshrl.u32 %v390, 7
      %v392 = vsub.s32 0, %v391
      %v393 = vrot.slane %v388, %v392
      %v411 = vunpack.c.l.b16 %v372
      %v412 = vunpack.c.l.b16 %v373
      %v413 = vunpack.c.l.b16 %v374
      %v414 = vunpack.c.l.b16 %v375
      %v415 = vunpack.c.l.b16 %v376
      %v416 = vunpack.c.l.b16 %v377
      %v417 = vunpack.c.l.b16 %v378
      %v418 = vunpack.c.l.b16 %v379
      %v419 = vunpack.c.l.b16 %v380
      %v420 = vunpack.c.l.b16 %v381
      %v421 = vunpack.c.l.b16 %v382
      %v422 = vunpack.c.l.b16 %v383
      %v423 = vunpack.c.l.b16 %v384
      %v424 = vunpack.c.l.b16 %v385
      %v425 = vunpack.c.l.b16 %v386
      %v426 = vunpack.c.l.b16 %v387
      %v427 = vpack.c.b16 %v412, %v411
      %v428 = vpack.c.b16 %v414, %v413
      %v429 = vpack.c.b16 %v416, %v415
      %v430 = vpack.c.b16 %v418, %v417
      %v431 = vpack.c.b16 %v420, %v419
      %v432 = vpack.c.b16 %v422, %v421
      %v433 = vpack.c.b16 %v424, %v423
      %v434 = vpack.c.b16 %v426, %v425
      %443 = vmatprep.subr.bf16.mxu0 0
      %444 = vmatpush1.bf16.msra.mxu0 %v434
      %445 = vmatprep.subr.bf16.mxu0 0
      %446 = vmatpush1.bf16.msra.mxu0 %v433
      %447 = vmatprep.subr.bf16.mxu0 0
      %448 = vmatpush1.bf16.msra.mxu0 %v432
      %449 = vmatprep.subr.bf16.mxu0 0
      %450 = vmatpush1.bf16.msra.mxu0 %v431
      %451 = vmatprep.subr.bf16.mxu0 0
      %452 = vmatpush1.bf16.msra.mxu0 %v430
      %453 = vmatprep.subr.bf16.mxu0 0
      %454 = vmatpush1.bf16.msra.mxu0 %v429
      %455 = vmatprep.subr.bf16.mxu0 0
      %456 = vmatpush1.bf16.msra.mxu0 %v428
      %457 = vmatprep.subr.bf16.mxu0 0
      %458 = vmatpush1.bf16.msra.mxu0 %v427
      %459 = vmatprep.subr.bf16.mxu0 0
      %460 = vmatpush2.bf16.msra.mxu0 0
      %461 = vmatprep.subr.bf16.mxu0 0
      %462 = vmatpush2.bf16.msra.mxu0 0
      %463 = vmatprep.subr.bf16.mxu0 0
      %464 = vmatpush2.bf16.msra.mxu0 0
      %465 = vmatprep.subr.bf16.mxu0 0
      %466 = vmatpush2.bf16.msra.mxu0 0
      %467 = vmatprep.subr.bf16.mxu0 0
      %468 = vmatpush2.bf16.msra.mxu0 0
      %469 = vmatprep.subr.bf16.mxu0 0
      %470 = vmatpush2.bf16.msra.mxu0 0
      %471 = vmatprep.subr.bf16.mxu0 0
      %472 = vmatpush2.bf16.msra.mxu0 0
      %473 = vmatprep.subr.bf16.mxu0 0
      %474 = vmatpush2.bf16.msra.mxu0 0
      %475 = vmatprep.mubr.bf16.mxu0 0
      %476 = vmatmul.mubr.bf16.gmra.mxu0 %v371
      %v477 = vpop.f32.mrf.mxu0
      %v478 = vadd.f32 %v393, %v477
      %v479 = vpop.f32.mrf.mxu0
      %v480 = vpop.f32.mrf.mxu0
      %v481 = vpop.f32.mrf.mxu0
      %482 = vdwg.mxu0
      %v483 = vmax.f32 %v478, 0.0
      %484 = vst [vmem:[#allocation4] sm:$0xff] %v483
      %v485 = vpack.c.bf16 %v483, %v483
      %486 = vst [vmem:[#allocation6] sm:$0xf] %v485
      %v487 = vld [vmem:[%s8] sm:$0xf]
      %v488 = vld [vmem:[%s8 + $0x4] sm:$0xf]
      %v489 = vld [vmem:[%s8 + $0x8] sm:$0xf]
      %v490 = vld [vmem:[%s8 + $0xc] sm:$0xf]
      %v491 = vld [vmem:[%s8 + $0x10] sm:$0xf]
      %v492 = vld [vmem:[%s8 + $0x14] sm:$0xf]
      %v493 = vld [vmem:[%s8 + $0x18] sm:$0xf]
      %v494 = vld [vmem:[%s8 + $0x1c] sm:$0xf]
      %v495 = vld [vmem:[%s8 + $0x20] sm:$0xf]
      %v496 = vld [vmem:[%s8 + $0x24] sm:$0xf]
      %v497 = vld [vmem:[%s8 + $0x28] sm:$0xf]
      %v498 = vld [vmem:[%s8 + $0x2c] sm:$0xf]
      %v499 = vld [vmem:[%s8 + $0x30] sm:$0xf]
      %v500 = vld [vmem:[%s8 + $0x34] sm:$0xf]
      %v501 = vld [vmem:[%s8 + $0x38] sm:$0xf]
      %v502 = vld [vmem:[%s8 + $0x3c] sm:$0xf]
      %v503 = vld [vmem:[%s9] sm:$0x1]
      %v505 = vlaneseq
      %v506 = vshrl.u32 %v505, 7
      %v507 = vsub.s32 0, %v506
      %v508 = vrot.slane %v503, %v507
      %v526 = vunpack.c.l.b16 %v487
      %v527 = vunpack.c.l.b16 %v488
      %v528 = vunpack.c.l.b16 %v489
      %v529 = vunpack.c.l.b16 %v490
      %v530 = vunpack.c.l.b16 %v491
      %v531 = vunpack.c.l.b16 %v492
      %v532 = vunpack.c.l.b16 %v493
      %v533 = vunpack.c.l.b16 %v494
      %v534 = vunpack.c.l.b16 %v495
      %v535 = vunpack.c.l.b16 %v496
      %v536 = vunpack.c.l.b16 %v497
      %v537 = vunpack.c.l.b16 %v498
      %v538 = vunpack.c.l.b16 %v499
      %v539 = vunpack.c.l.b16 %v500
      %v540 = vunpack.c.l.b16 %v501
      %v541 = vunpack.c.l.b16 %v502
      %v542 = vpack.c.b16 %v527, %v526
      %v543 = vpack.c.b16 %v529, %v528
      %v544 = vpack.c.b16 %v531, %v530
      %v545 = vpack.c.b16 %v533, %v532
      %v546 = vpack.c.b16 %v535, %v534
      %v547 = vpack.c.b16 %v537, %v536
      %v548 = vpack.c.b16 %v539, %v538
      %v549 = vpack.c.b16 %v541, %v540
      %558 = vmatprep.subr.bf16.mxu0 0
      %559 = vmatpush1.bf16.msra.mxu0 %v549
      %560 = vmatprep.subr.bf16.mxu0 0
      %561 = vmatpush1.bf16.msra.mxu0 %v548
      %562 = vmatprep.subr.bf16.mxu0 0
      %563 = vmatpush1.bf16.msra.mxu0 %v547
      %564 = vmatprep.subr.bf16.mxu0 0
      %565 = vmatpush1.bf16.msra.mxu0 %v546
      %566 = vmatprep.subr.bf16.mxu0 0
      %567 = vmatpush1.bf16.msra.mxu0 %v545
      %568 = vmatprep.subr.bf16.mxu0 0
      %569 = vmatpush1.bf16.msra.mxu0 %v544
      %570 = vmatprep.subr.bf16.mxu0 0
      %571 = vmatpush1.bf16.msra.mxu0 %v543
      %572 = vmatprep.subr.bf16.mxu0 0
      %573 = vmatpush1.bf16.msra.mxu0 %v542
      %574 = vmatprep.subr.bf16.mxu0 0
      %575 = vmatpush2.bf16.msra.mxu0 0
      %576 = vmatprep.subr.bf16.mxu0 0
      %577 = vmatpush2.bf16.msra.mxu0 0
      %578 = vmatprep.subr.bf16.mxu0 0
      %579 = vmatpush2.bf16.msra.mxu0 0
      %580 = vmatprep.subr.bf16.mxu0 0
      %581 = vmatpush2.bf16.msra.mxu0 0
      %582 = vmatprep.subr.bf16.mxu0 0
      %583 = vmatpush2.bf16.msra.mxu0 0
      %584 = vmatprep.subr.bf16.mxu0 0
      %585 = vmatpush2.bf16.msra.mxu0 0
      %586 = vmatprep.subr.bf16.mxu0 0
      %587 = vmatpush2.bf16.msra.mxu0 0
      %588 = vmatprep.subr.bf16.mxu0 0
      %589 = vmatpush2.bf16.msra.mxu0 0
      %590 = vmatprep.mubr.bf16.mxu0 0
      %591 = vmatmul.mubr.bf16.gmra.mxu0 %v485
      %v592 = vpop.f32.mrf.mxu0
      %v593 = vadd.f32 %v508, %v592
      %v594 = vpop.f32.mrf.mxu0
      %v595 = vpop.f32.mrf.mxu0
      %v596 = vpop.f32.mrf.mxu0
      %597 = vdwg.mxu0
      %598 = vst [vmem:[#allocation8] sm:$0xff] %v593
    $region49: #{tpu_custom_call.1} parent=1 // pred_fallthru
      _
    // Predicated region
    $region50: #{tpu_custom_call.1} parent=1 // pred_check
      _
    $region51: #{tpu_custom_call.1} parent=1 // pred_check_branch
      %600 = sbr.rel (0) target = $region53
    $region52: #{tpu_custom_call.1} parent=1 // pred_region
      %s602 = ssub.s32 128, 128
      %603 = vsyncadd [#allocation5], %s602
      %s605 = sshll.u32 [#allocation4], 4
      %s606 = int_to_ptr.vmem [resolvable:$true] %s605
      %608 = dma.vmem_to_hbm [thread:$0]  %s606, 128, %s10, [#allocation5]
    $region53: #{tpu_custom_call.1} parent=1 // pred_fallthru
      _
    // Predicated region
    $region54: #{tpu_custom_call.1} parent=1 // pred_check
      _
    $region55: #{tpu_custom_call.1} parent=1 // pred_check_branch
      %610 = sbr.rel (0) target = $region57
    $region56: #{tpu_custom_call.1} parent=1 // pred_region
      %s612 = ssub.s32 64, 64
      %613 = vsyncadd [#allocation7], %s612
      %s615 = sshll.u32 [#allocation6], 4
      %s616 = int_to_ptr.vmem [resolvable:$true] %s615
      %618 = dma.vmem_to_hbm [thread:$0]  %s616, 64, %s11, [#allocation7]
    $region57: #{tpu_custom_call.1} parent=1 // pred_fallthru
      _
    // Predicated region
    $region58: #{tpu_custom_call.1} parent=1 // pred_check
      _
    $region59: #{tpu_custom_call.1} parent=1 // pred_check_branch
      %620 = sbr.rel (0) target = $region61
    $region60: #{tpu_custom_call.1} parent=1 // pred_region
      %s622 = ssub.s32 128, 128
      %623 = vsyncadd [#allocation7], %s622
      %s625 = sshll.u32 [#allocation8], 4
      %s626 = int_to_ptr.vmem [resolvable:$true] %s625
      %628 = dma.vmem_to_hbm [thread:$0]  %s626, 128, %s12, [#allocation7]
    $region61: #{tpu_custom_call.1} parent=1 // pred_fallthru
      _
    // Predicated region
    $region62: #{tpu_custom_call.1} parent=1 // pred_check
      _
    $region63: #{tpu_custom_call.1} parent=1 // pred_check_branch
      %630 = sbr.rel (0) target = $region65
    $region64: #{tpu_custom_call.1} parent=1 // pred_region
      %631 = dma.done [#allocation5], 128
    $region65: #{tpu_custom_call.1} parent=1 // pred_fallthru
      _
    // Predicated region
    $region66: #{tpu_custom_call.1} parent=1 // pred_check
      _
    $region67: #{tpu_custom_call.1} parent=1 // pred_check_branch
      %633 = sbr.rel (0) target = $region69
    $region68: #{tpu_custom_call.1} parent=1 // pred_region
      %634 = dma.done [#allocation7], 64
    $region69: #{tpu_custom_call.1} parent=1 // pred_fallthru
      _
    // Predicated region
    $region70: #{tpu_custom_call.1} parent=1 // pred_check
      _
    $region71: #{tpu_custom_call.1} parent=1 // pred_check_branch
      %636 = sbr.rel (0) target = $region73
    $region72: #{tpu_custom_call.1} parent=1 // pred_region
      %637 = dma.done [#allocation7], 128
    $region73: #{tpu_custom_call.1} parent=1 // pred_fallthru
      _
    %638 = vsyncpa [#allocation5], 1
    %639 = vsyncpa [#allocation7], 1

</llo_original>
